<compile_context>
chip_gen: v7x
topology: tpu7x:2x2x1
jax: 0.10.0
libtpu: 0.0.40
codegen_flags: <defaults>
</compile_context>

<pallas_src>
import functools

import jax
import jax.numpy as jnp
from jax.experimental import pallas as pl
from jax.experimental.pallas import tpu as pltpu


def _round_up(x, m):
    return (x + m - 1) // m * m


# ----------------------------------------------------------------------------
# Fused Pallas kernel: conv (all branches) + ReLU + max-over-time + FC
# ----------------------------------------------------------------------------
def textcnn_kernel(x_ref, wc_ref, bc_ref, mask_ref, wfc_ref, bfc_ref, o_ref,
                   *, fs_max, l_pad):
    """One batch tile.

    x_ref:    (Bt, S_pad, E)   zero-padded embeddings
    wc_ref:   (K_max, N_pad)   packed conv weights (K_max = fs_max*E,
                               N_pad = pad(3*F, 128); unused rows/cols are 0)
    bc_ref:   (1, N_pad)       packed conv biases
    mask_ref: (L_pad, N_pad)   1.0 where the time position is valid for the
                               branch owning that output column, else 0.0
    wfc_ref:  (N_pad, O_pad)   padded FC weight (zero rows for padded cols)
    bfc_ref:  (1, O_pad)       padded FC bias
    o_ref:    (Bt, O_pad)      logits (lane-dense, padded)
    """
    bt, s_pad, e = x_ref.shape
    n_pad = wc_ref.shape[1]
    x = x_ref[...]                                            # (Bt, S_pad, E)

    # Convolution over time as fs_max shifted matmuls accumulated in f32:
    #   s[b*L + t, :] = sum_i x[b, t + i, :] @ W[i*E:(i+1)*E, :]
    s = jnp.zeros((bt * l_pad, n_pad), jnp.float32)
    for i in range(fs_max):                                   # static unroll
        xi = x[:, i:i + l_pad, :].reshape(bt * l_pad, e)      # (Bt*L, E)
        s = s + jnp.dot(xi, wc_ref[i * e:(i + 1) * e, :],
                        preferred_element_type=jnp.float32)

    s = jnp.maximum(s + bc_ref[...], 0.0)                     # bias + ReLU
    s = s.reshape(bt, l_pad, n_pad) * mask_ref[...]           # mask invalid t
    pooled = jnp.max(s, axis=1)                               # (Bt, N_pad)

    # Fused final Linear (FC) epilogue.
    o_ref[...] = (jnp.dot(pooled, wfc_ref[...],
                          preferred_element_type=jnp.float32)
                  + bfc_ref[...])


# ----------------------------------------------------------------------------
# Forward pass
# ----------------------------------------------------------------------------
@functools.partial(jax.jit, static_argnames=("filter_sizes",))
def model_cnn_forward(token_ids, params, filter_sizes):
    """token_ids: (B, S) int32.  Returns logits (B, output_dim) float32."""
    B, S = token_ids.shape
    E = params["embedding"].shape[1]
    F = params["conv_0_b"].shape[0]
    O = params["fc_b"].shape[0]
    n_branch = len(filter_sizes)
    fs_max = max(filter_sizes)
    fs_min = min(filter_sizes)

    L = S - fs_min + 1                       # positions valid for smallest fs
    L_pad = _round_up(L, 8)                  # sublane-aligned time positions
    S_pad = L_pad + fs_max - 1               # sequence length needed in-kernel
    N = n_branch * F
    N_pad = max(_round_up(N, 128), 128)      # lane-dense fused conv output
    O_pad = max(_round_up(O, 128), 128)      # lane-dense logits
    K_max = fs_max * E

    BT = min(_round_up(B, 8), 64)            # batch rows per grid step
    B_pad = _round_up(B, BT)

    # --- glue (XLA): embedding gather + zero padding ---
    embedded = params["embedding"][token_ids]                 # (B, S, E)
    x = jnp.pad(embedded, ((0, B_pad - B), (0, S_pad - S), (0, 0)))

    # --- pack conv weights / bias / per-branch time-validity mask ---
    w_parts, b_parts, m_parts = [], [], []
    for i, fs in enumerate(filter_sizes):
        w = params[f"conv_{i}_w"].reshape(F, fs * E).T        # (fs*E, F)
        w_parts.append(jnp.pad(w, ((0, K_max - fs * E), (0, 0))))
        b_parts.append(params[f"conv_{i}_b"])
        valid = S - fs + 1
        col = (jnp.arange(L_pad) < valid).astype(jnp.float32)[:, None]
        m_parts.append(jnp.broadcast_to(col, (L_pad, F)))
    w_conv = jnp.pad(jnp.concatenate(w_parts, axis=1),
                     ((0, 0), (0, N_pad - N)))                # (K_max, N_pad)
    b_conv = jnp.pad(jnp.concatenate(b_parts)[None, :],
                     ((0, 0), (0, N_pad - N)))                # (1, N_pad)
    mask = jnp.pad(jnp.concatenate(m_parts, axis=1),
                   ((0, 0), (0, N_pad - N)))                  # (L_pad, N_pad)

    w_fc = jnp.pad(params["fc_w"].T,
                   ((0, N_pad - N), (0, O_pad - O)))          # (N_pad, O_pad)
    b_fc = jnp.pad(params["fc_b"][None, :], ((0, 0), (0, O_pad - O)))

    # TODO(synk): nn.Dropout is identity in eval mode; training-mode dropout omitted.

    kernel = functools.partial(textcnn_kernel, fs_max=fs_max, l_pad=L_pad)
    out_padded = pl.pallas_call(
        kernel,
        out_shape=jax.ShapeDtypeStruct((B_pad, O_pad), jnp.float32),
        grid_spec=pltpu.PrefetchScalarGridSpec(
            num_scalar_prefetch=0,
            grid=(B_pad // BT,),
            in_specs=[
                pl.BlockSpec((BT, S_pad, E), lambda b: (b, 0, 0)),
                pl.BlockSpec((K_max, N_pad), lambda b: (0, 0)),
                pl.BlockSpec((1, N_pad), lambda b: (0, 0)),
                pl.BlockSpec((L_pad, N_pad), lambda b: (0, 0)),
                pl.BlockSpec((N_pad, O_pad), lambda b: (0, 0)),
                pl.BlockSpec((1, O_pad), lambda b: (0, 0)),
            ],
            out_specs=pl.BlockSpec((BT, O_pad), lambda b: (b, 0)),
        ),
        compiler_params=pltpu.CompilerParams(
            dimension_semantics=("parallel",)),
    )(x, w_conv, b_conv, mask, w_fc, b_fc)

    return out_padded[:B, :O]


# ----------------------------------------------------------------------------
# Params / reference
# ----------------------------------------------------------------------------
def init_params(key, vocab_size, embedding_dim, n_filters, filter_sizes,
                output_dim):
    keys = jax.random.split(key, 3 + 2 * len(filter_sizes))
    params = {
        "embedding": 0.1 * jax.random.normal(
            keys[0], (vocab_size, embedding_dim), jnp.float32),
        "fc_w": 0.1 * jax.random.normal(
            keys[1], (output_dim, len(filter_sizes) * n_filters), jnp.float32),
        "fc_b": 0.01 * jax.random.normal(keys[2], (output_dim,), jnp.float32),
    }
    for i, fs in enumerate(filter_sizes):
        params[f"conv_{i}_w"] = 0.1 * jax.random.normal(
            keys[3 + 2 * i], (n_filters, 1, fs, embedding_dim), jnp.float32)
        params[f"conv_{i}_b"] = 0.01 * jax.random.normal(
            keys[4 + 2 * i], (n_filters,), jnp.float32)
    return params


def reference_forward(token_ids, params, filter_sizes):
    """Pure-JAX reference mirroring the PyTorch forward (eval mode)."""
    emb = params["embedding"][token_ids]                      # (B, S, E)
    pooled = []
    for i, fs in enumerate(filter_sizes):
        w = params[f"conv_{i}_w"][:, 0]                       # (F, fs, E)
        b = params[f"conv_{i}_b"]
        L = emb.shape[1] - fs + 1
        conv = jnp.stack(
            [jnp.einsum("bwe,fwe->bf", emb[:, t:t + fs, :], w)
             for t in range(L)], axis=-1) + b[None, :, None]  # (B, F, L)
        pooled.append(jnp.max(jax.nn.relu(conv), axis=-1))    # (B, F)
    cat = jnp.concatenate(pooled, axis=1)
    return cat @ params["fc_w"].T + params["fc_b"]


if __name__ == "__main__":
    # Small, deterministic configuration.
    vocab_size = 50
    embedding_dim = 32
    n_filters = 8
    filter_sizes = (3, 4, 5)
    output_dim = 4
    batch = 2
    seq_len = 8

    key = jax.random.PRNGKey(0)
    k_tok, k_par = jax.random.split(key)

    token_ids = jax.random.randint(k_tok, (batch, seq_len), 0, vocab_size,
                                   dtype=jnp.int32)
    params = init_params(k_par, vocab_size, embedding_dim, n_filters,
                         filter_sizes, output_dim)

    logits = model_cnn_forward(token_ids, params, filter_sizes)
    jax.block_until_ready(logits)
    assert logits.shape == (batch, output_dim), logits.shape

    ref = reference_forward(token_ids, params, filter_sizes)
    err = float(jnp.max(jnp.abs(logits - ref)))
    assert err < 1e-2, f"max abs error vs reference: {err}"

    print("KERNEL_OK")
</pallas_src>

<mosaic_0001>
module attributes {stable_mosaic.version = 11 : i64} {
  func.func @textcnn_kernel(%arg0: i32, %arg1: memref<8x12x32xf32, #tpu.memory_space<vmem>>, %arg2: memref<160x128xf32, #tpu.memory_space<vmem>>, %arg3: memref<1x128xf32, #tpu.memory_space<vmem>>, %arg4: memref<8x128xf32, #tpu.memory_space<vmem>>, %arg5: memref<128x128xf32, #tpu.memory_space<vmem>>, %arg6: memref<1x128xf32, #tpu.memory_space<vmem>>, %arg7: memref<8x128xf32, #tpu.memory_space<vmem>>) attributes {dimension_semantics = [#tpu.dimension_semantics<parallel>], iteration_bounds = array<i64: 1>, scalar_prefetch = 0 : i64, scratch_operands = 0 : i64, tpu.core_type = #tpu.core_type<tc>, window_params = [{transform_indices = @transform_0, window_bounds = array<i64: 8, 12, 32>}, {pipeline_mode = #tpu.pipeline_mode<synchronous>, transform_indices = @transform_1, window_bounds = array<i64: 160, 128>}, {pipeline_mode = #tpu.pipeline_mode<synchronous>, transform_indices = @transform_2, window_bounds = array<i64: 1, 128>}, {pipeline_mode = #tpu.pipeline_mode<synchronous>, transform_indices = @transform_3, window_bounds = array<i64: 8, 128>}, {pipeline_mode = #tpu.pipeline_mode<synchronous>, transform_indices = @transform_4, window_bounds = array<i64: 128, 128>}, {pipeline_mode = #tpu.pipeline_mode<synchronous>, transform_indices = @transform_5, window_bounds = array<i64: 1, 128>}, {transform_indices = @transform_6, window_bounds = array<i64: 8, 128>}]} {
    %c0 = arith.constant 0 : index
    %c0_0 = arith.constant 0 : index
    %c0_1 = arith.constant 0 : index
    %0 = vector.load %arg1[%c0, %c0_0, %c0_1] : memref<8x12x32xf32, #tpu.memory_space<vmem>>, vector<8x12x32xf32>
    %cst = arith.constant 0.000000e+00 : f32
    %1 = vector.broadcast %cst : f32 to vector<64x128xf32>
    %2 = vector.extract_strided_slice %0 {offsets = [0, 0, 0], sizes = [8, 8, 32], strides = [1, 1, 1]} : vector<8x12x32xf32> to vector<8x8x32xf32>
    %3 = vector.shape_cast %2 : vector<8x8x32xf32> to vector<64x32xf32>
    %c0_2 = arith.constant 0 : index
    %c0_3 = arith.constant 0 : index
    %4 = vector.load %arg2[%c0_2, %c0_3] : memref<160x128xf32, #tpu.memory_space<vmem>>, vector<32x128xf32>
    %cst_4 = arith.constant dense<0.000000e+00> : vector<64x128xf32>
    %5 = tpu.matmul %3, %4, %cst_4 {dimension_numbers = #tpu.dot_dimension_numbers<[1], [0], [0], [1], [0, 0, 1, 1], [], []>} : vector<64x32xf32>, vector<32x128xf32>, vector<64x128xf32> -> vector<64x128xf32>
    %6 = arith.addf %1, %5 : vector<64x128xf32>
    %7 = vector.extract_strided_slice %0 {offsets = [0, 1, 0], sizes = [8, 8, 32], strides = [1, 1, 1]} : vector<8x12x32xf32> to vector<8x8x32xf32>
    %8 = vector.shape_cast %7 : vector<8x8x32xf32> to vector<64x32xf32>
    %c32 = arith.constant 32 : index
    %c0_5 = arith.constant 0 : index
    %9 = vector.load %arg2[%c32, %c0_5] : memref<160x128xf32, #tpu.memory_space<vmem>>, vector<32x128xf32>
    %cst_6 = arith.constant dense<0.000000e+00> : vector<64x128xf32>
    %10 = tpu.matmul %8, %9, %cst_6 {dimension_numbers = #tpu.dot_dimension_numbers<[1], [0], [0], [1], [0, 0, 1, 1], [], []>} : vector<64x32xf32>, vector<32x128xf32>, vector<64x128xf32> -> vector<64x128xf32>
    %11 = arith.addf %6, %10 : vector<64x128xf32>
    %12 = vector.extract_strided_slice %0 {offsets = [0, 2, 0], sizes = [8, 8, 32], strides = [1, 1, 1]} : vector<8x12x32xf32> to vector<8x8x32xf32>
    %13 = vector.shape_cast %12 : vector<8x8x32xf32> to vector<64x32xf32>
    %c64 = arith.constant 64 : index
    %c0_7 = arith.constant 0 : index
    %14 = vector.load %arg2[%c64, %c0_7] : memref<160x128xf32, #tpu.memory_space<vmem>>, vector<32x128xf32>
    %cst_8 = arith.constant dense<0.000000e+00> : vector<64x128xf32>
    %15 = tpu.matmul %13, %14, %cst_8 {dimension_numbers = #tpu.dot_dimension_numbers<[1], [0], [0], [1], [0, 0, 1, 1], [], []>} : vector<64x32xf32>, vector<32x128xf32>, vector<64x128xf32> -> vector<64x128xf32>
    %16 = arith.addf %11, %15 : vector<64x128xf32>
    %17 = vector.extract_strided_slice %0 {offsets = [0, 3, 0], sizes = [8, 8, 32], strides = [1, 1, 1]} : vector<8x12x32xf32> to vector<8x8x32xf32>
    %18 = vector.shape_cast %17 : vector<8x8x32xf32> to vector<64x32xf32>
    %c96 = arith.constant 96 : index
    %c0_9 = arith.constant 0 : index
    %19 = vector.load %arg2[%c96, %c0_9] : memref<160x128xf32, #tpu.memory_space<vmem>>, vector<32x128xf32>
    %cst_10 = arith.constant dense<0.000000e+00> : vector<64x128xf32>
    %20 = tpu.matmul %18, %19, %cst_10 {dimension_numbers = #tpu.dot_dimension_numbers<[1], [0], [0], [1], [0, 0, 1, 1], [], []>} : vector<64x32xf32>, vector<32x128xf32>, vector<64x128xf32> -> vector<64x128xf32>
    %21 = arith.addf %16, %20 : vector<64x128xf32>
    %22 = vector.extract_strided_slice %0 {offsets = [0, 4, 0], sizes = [8, 8, 32], strides = [1, 1, 1]} : vector<8x12x32xf32> to vector<8x8x32xf32>
    %23 = vector.shape_cast %22 : vector<8x8x32xf32> to vector<64x32xf32>
    %c128 = arith.constant 128 : index
    %c0_11 = arith.constant 0 : index
    %24 = vector.load %arg2[%c128, %c0_11] : memref<160x128xf32, #tpu.memory_space<vmem>>, vector<32x128xf32>
    %cst_12 = arith.constant dense<0.000000e+00> : vector<64x128xf32>
    %25 = tpu.matmul %23, %24, %cst_12 {dimension_numbers = #tpu.dot_dimension_numbers<[1], [0], [0], [1], [0, 0, 1, 1], [], []>} : vector<64x32xf32>, vector<32x128xf32>, vector<64x128xf32> -> vector<64x128xf32>
    %26 = arith.addf %21, %25 : vector<64x128xf32>
    %c0_13 = arith.constant 0 : index
    %c0_14 = arith.constant 0 : index
    %27 = vector.load %arg3[%c0_13, %c0_14] : memref<1x128xf32, #tpu.memory_space<vmem>>, vector<1x128xf32>
    %28 = vector.broadcast %27 : vector<1x128xf32> to vector<64x128xf32>
    %29 = arith.addf %26, %28 : vector<64x128xf32>
    %cst_15 = arith.constant 0.000000e+00 : f32
    %30 = vector.broadcast %cst_15 : f32 to vector<64x128xf32>
    %31 = arith.maximumf %29, %30 : vector<64x128xf32>
    %32 = vector.shape_cast %31 : vector<64x128xf32> to vector<8x8x128xf32>
    %c0_16 = arith.constant 0 : index
    %c0_17 = arith.constant 0 : index
    %33 = vector.load %arg4[%c0_16, %c0_17] : memref<8x128xf32, #tpu.memory_space<vmem>>, vector<8x128xf32>
    %34 = vector.shape_cast %33 : vector<8x128xf32> to vector<1x8x128xf32>
    %35 = vector.broadcast %34 : vector<1x8x128xf32> to vector<8x8x128xf32>
    %36 = arith.mulf %32, %35 : vector<8x8x128xf32>
    %cst_18 = arith.constant dense<0xFF800000> : vector<8x128xf32>
    %37 = vector.multi_reduction <maximumf>, %36, %cst_18 [1] : vector<8x8x128xf32> to vector<8x128xf32>
    %c0_19 = arith.constant 0 : index
    %c0_20 = arith.constant 0 : index
    %38 = vector.load %arg5[%c0_19, %c0_20] : memref<128x128xf32, #tpu.memory_space<vmem>>, vector<128x128xf32>
    %cst_21 = arith.constant dense<0.000000e+00> : vector<8x128xf32>
    %39 = tpu.matmul %37, %38, %cst_21 {dimension_numbers = #tpu.dot_dimension_numbers<[1], [0], [0], [1], [0, 0, 1, 1], [], []>} : vector<8x128xf32>, vector<128x128xf32>, vector<8x128xf32> -> vector<8x128xf32>
    %c0_22 = arith.constant 0 : index
    %c0_23 = arith.constant 0 : index
    %40 = vector.load %arg6[%c0_22, %c0_23] : memref<1x128xf32, #tpu.memory_space<vmem>>, vector<1x128xf32>
    %41 = vector.broadcast %40 : vector<1x128xf32> to vector<8x128xf32>
    %42 = arith.addf %39, %41 : vector<8x128xf32>
    %c0_24 = arith.constant 0 : index
    %c0_25 = arith.constant 0 : index
    %43 = vector.load %arg7[%c0_24, %c0_25] : memref<8x128xf32, #tpu.memory_space<vmem>>, vector<8x128xf32>
    tpu.vector_store %arg7[%c0_24, %c0_25], %42 {strides = array<i32>} : memref<8x128xf32, #tpu.memory_space<vmem>>, vector<8x128xf32>,
    return
  }
  func.func @transform_0(%arg0: i32) -> (i32, i32, i32) {
    %c0_i32 = arith.constant 0 : i32
    %c0_i32_0 = arith.constant 0 : i32
    %c0_i32_1 = arith.constant 0 : i32
    return %arg0, %c0_i32, %c0_i32_0 : i32, i32, i32
  }
  func.func @transform_1(%arg0: i32) -> (i32, i32) {
    %c0_i32 = arith.constant 0 : i32
    %c0_i32_0 = arith.constant 0 : i32
    %c0_i32_1 = arith.constant 0 : i32
    return %c0_i32, %c0_i32_0 : i32, i32
  }
  func.func @transform_2(%arg0: i32) -> (i32, i32) {
    %c0_i32 = arith.constant 0 : i32
    %c0_i32_0 = arith.constant 0 : i32
    %c0_i32_1 = arith.constant 0 : i32
    return %c0_i32, %c0_i32_0 : i32, i32
  }
  func.func @transform_3(%arg0: i32) -> (i32, i32) {
    %c0_i32 = arith.constant 0 : i32
    %c0_i32_0 = arith.constant 0 : i32
    %c0_i32_1 = arith.constant 0 : i32
    return %c0_i32, %c0_i32_0 : i32, i32
  }
  func.func @transform_4(%arg0: i32) -> (i32, i32) {
    %c0_i32 = arith.constant 0 : i32
    %c0_i32_0 = arith.constant 0 : i32
    %c0_i32_1 = arith.constant 0 : i32
    return %c0_i32, %c0_i32_0 : i32, i32
  }
  func.func @transform_5(%arg0: i32) -> (i32, i32) {
    %c0_i32 = arith.constant 0 : i32
    %c0_i32_0 = arith.constant 0 : i32
    %c0_i32_1 = arith.constant 0 : i32
    return %c0_i32, %c0_i32_0 : i32, i32
  }
  func.func @transform_6(%arg0: i32) -> (i32, i32) {
    %c0_i32 = arith.constant 0 : i32
    %c0_i32_0 = arith.constant 0 : i32
    return %arg0, %c0_i32 : i32, i32
  }
}

</mosaic_0001>

<llo_original>
// kernel: model_cnn_forward.1
$region0: #{model_cnn_forward.1}
  #allocation0 [shape = 'u32[]', space=smem, size = 0x4, offset = 0x4, fixed_abs, tag = 'smem constant byte address 0x4 - core index']
  #allocation1 [shape = 'u32[144,128]{1,0:T(1,128)}', space=vmem, size = 0x12000, scoped, tag = 'internal scratch']
  %s0 = inlined_call_operand.vmem [shape: f32[8,12,32], index: 0, kind: input, shape index: {}]
  %s1 = inlined_call_operand.vmem [shape: f32[160,128], index: 1, kind: input, shape index: {}]
  %s2 = inlined_call_operand.vmem [shape: f32[1,128], index: 2, kind: input, shape index: {}]
  %s3 = inlined_call_operand.vmem [shape: f32[8,128], index: 3, kind: input, shape index: {}]
  %s4 = inlined_call_operand.vmem [shape: f32[128,128], index: 4, kind: input, shape index: {}]
  %s5 = inlined_call_operand.vmem [shape: f32[1,128], index: 5, kind: input, shape index: {}]
  %s6 = inlined_call_operand.vmem [shape: f32[8,128], index: 6, kind: output, shape index: {}]
  %s7 = sld [smem:[#allocation0]]
  $region34: #{model_cnn_forward.1} parent=0
    _
  %s9 = ssub.s32 1, %s7
  %s10 = scalar_select 0, %s9, %s7
  // Predicated region
  $region2: #{model_cnn_forward.1} parent=0 // pred_check
    _
  $region3: #{model_cnn_forward.1} parent=0 // pred_check_branch
    %12 = sbr.rel (0) target = $region5
  $region4: #{model_cnn_forward.1} parent=0 // pred_region
    _
  $region5: #{model_cnn_forward.1} parent=0 // pred_fallthru
    _
  // Predicated region
  $region6: #{model_cnn_forward.1} parent=0 // pred_check
    _
  $region7: #{model_cnn_forward.1} parent=0 // pred_check_branch
    %14 = sbr.rel (0) target = $region9
  $region8: #{model_cnn_forward.1} parent=0 // pred_region
    _
  $region9: #{model_cnn_forward.1} parent=0 // pred_fallthru
    _
  // Predicated region
  $region10: #{model_cnn_forward.1} parent=0 // pred_check
    _
  $region11: #{model_cnn_forward.1} parent=0 // pred_check_branch
    %16 = sbr.rel (0) target = $region13
  $region12: #{model_cnn_forward.1} parent=0 // pred_region
    _
  $region13: #{model_cnn_forward.1} parent=0 // pred_fallthru
    _
  // Predicated region
  $region14: #{model_cnn_forward.1} parent=0 // pred_check
    _
  $region15: #{model_cnn_forward.1} parent=0 // pred_check_branch
    %18 = sbr.rel (0) target = $region17
  $region16: #{model_cnn_forward.1} parent=0 // pred_region
    _
  $region17: #{model_cnn_forward.1} parent=0 // pred_fallthru
    _
  // Predicated region
  $region18: #{model_cnn_forward.1} parent=0 // pred_check
    _
  $region19: #{model_cnn_forward.1} parent=0 // pred_check_branch
    %20 = sbr.rel (0) target = $region21
  $region20: #{model_cnn_forward.1} parent=0 // pred_region
    _
  $region21: #{model_cnn_forward.1} parent=0 // pred_fallthru
    _
  // Predicated region
  $region22: #{model_cnn_forward.1} parent=0 // pred_check
    _
  $region23: #{model_cnn_forward.1} parent=0 // pred_check_branch
    %22 = sbr.rel (0) target = $region25
  $region24: #{model_cnn_forward.1} parent=0 // pred_region
    _
  $region25: #{model_cnn_forward.1} parent=0 // pred_fallthru
    _
  %v23 = vld [vmem:[%s0] sm:$0xff]
  %v24 = vld [vmem:[%s0 + $0x8] sm:$0xf]
  %v25 = vld [vmem:[%s0 + $0x10] sm:$0xff]
  %v26 = vld [vmem:[%s0 + $0x18] sm:$0xf]
  %v27 = vld [vmem:[%s0 + $0x20] sm:$0xff]
  %v28 = vld [vmem:[%s0 + $0x28] sm:$0xf]
  %v29 = vld [vmem:[%s0 + $0x30] sm:$0xff]
  %v30 = vld [vmem:[%s0 + $0x38] sm:$0xf]
  %v31 = vld [vmem:[%s0 + $0x40] sm:$0xff]
  %v32 = vld [vmem:[%s0 + $0x48] sm:$0xf]
  %v33 = vld [vmem:[%s0 + $0x50] sm:$0xff]
  %v34 = vld [vmem:[%s0 + $0x58] sm:$0xf]
  %v35 = vld [vmem:[%s0 + $0x60] sm:$0xff]
  %v36 = vld [vmem:[%s0 + $0x68] sm:$0xf]
  %v37 = vld [vmem:[%s0 + $0x70] sm:$0xff]
  %v38 = vld [vmem:[%s0 + $0x78] sm:$0xf]
  %v39 = vld [vmem:[%s1] sm:$0xff]
  %v40 = vld [vmem:[%s1 + $0x8] sm:$0xff]
  %v41 = vld [vmem:[%s1 + $0x10] sm:$0xff]
  %v42 = vld [vmem:[%s1 + $0x18] sm:$0xff]
  %vm59 = vcmask 1046528
  %v60 = vrot.slane %v23, 1
  %v61 = vrot.slane %v24, 1
  %v62 = vsel %vm59, %v60, %v61
  %v63 = vrot.slane %v25, 1
  %v64 = vrot.slane %v26, 1
  %v65 = vsel %vm59, %v63, %v64
  %v66 = vrot.slane %v27, 1
  %v67 = vrot.slane %v28, 1
  %v68 = vsel %vm59, %v66, %v67
  %v69 = vrot.slane %v29, 1
  %v70 = vrot.slane %v30, 1
  %v71 = vsel %vm59, %v69, %v70
  %v72 = vrot.slane %v31, 1
  %v73 = vrot.slane %v32, 1
  %v74 = vsel %vm59, %v72, %v73
  %v75 = vrot.slane %v33, 1
  %v76 = vrot.slane %v34, 1
  %v77 = vsel %vm59, %v75, %v76
  %v78 = vrot.slane %v35, 1
  %v79 = vrot.slane %v36, 1
  %v80 = vsel %vm59, %v78, %v79
  %v81 = vrot.slane %v37, 1
  %v82 = vrot.slane %v38, 1
  %v83 = vsel %vm59, %v81, %v82
  %v84 = vld [vmem:[%s1 + $0x20] sm:$0xff]
  %v85 = vld [vmem:[%s1 + $0x28] sm:$0xff]
  %v86 = vld [vmem:[%s1 + $0x30] sm:$0xff]
  %v87 = vld [vmem:[%s1 + $0x38] sm:$0xff]
  %vm88 = vcmask 261120
  %v89 = vsel %vm88, %v62, 0
  %v91 = vsel %vm88, %v65, 0
  %v93 = vsel %vm88, %v68, 0
  %v95 = vsel %vm88, %v71, 0
  %v97 = vsel %vm88, %v74, 0
  %v99 = vsel %vm88, %v77, 0
  %v101 = vsel %vm88, %v80, 0
  %v103 = vsel %vm88, %v83, 0
  %105 = vmatprep.subr.mxu0 0.0
  %106 = vmatpush1.msra.mxu0 %v84
  %107 = vmatprep.subr.mxu0 0.0
  %108 = vmatpush1.msra.mxu0 %v85
  %109 = vmatprep.subr.mxu0 0.0
  %110 = vmatpush1.msra.mxu0 %v86
  %111 = vmatprep.subr.mxu0 0.0
  %112 = vmatpush1.msra.mxu0 %v87
  %113 = vmatprep.subr.mxu0 0.0
  %114 = vmatpush1.msra.mxu0 0.0
  %115 = vmatprep.subr.mxu0 0.0
  %116 = vmatpush1.msra.mxu0 0.0
  %117 = vmatprep.subr.mxu0 0.0
  %118 = vmatpush1.msra.mxu0 0.0
  %119 = vmatprep.subr.mxu0 0.0
  %120 = vmatpush1.msra.mxu0 0.0
  %121 = vmatprep.subr.mxu0 0.0
  %122 = vmatpush1.msra.mxu0 0.0
  %123 = vmatprep.subr.mxu0 0.0
  %124 = vmatpush1.msra.mxu0 0.0
  %125 = vmatprep.subr.mxu0 0.0
  %126 = vmatpush1.msra.mxu0 0.0
  %127 = vmatprep.subr.mxu0 0.0
  %128 = vmatpush1.msra.mxu0 0.0
  %129 = vmatprep.subr.mxu0 0.0
  %130 = vmatpush1.msra.mxu0 0.0
  %131 = vmatprep.subr.mxu0 0.0
  %132 = vmatpush1.msra.mxu0 0.0
  %133 = vmatprep.subr.mxu0 0.0
  %134 = vmatpush1.msra.mxu0 0.0
  %135 = vmatprep.subr.mxu0 0.0
  %136 = vmatpush1.msra.mxu0 0.0
  %137 = vmatprep.subr.mxu0 0.0
  %138 = vmatpush1.msra.mxu0 0.0
  %139 = vmatprep.subr.mxu0 0.0
  %140 = vmatpush1.msra.mxu0 0.0
  %141 = vmatprep.subr.mxu0 0.0
  %142 = vmatpush1.msra.mxu0 0.0
  %143 = vmatprep.subr.mxu0 0.0
  %144 = vmatpush1.msra.mxu0 0.0
  %145 = vmatprep.subr.mxu0 0.0
  %146 = vmatpush1.msra.mxu0 0.0
  %147 = vmatprep.subr.mxu0 0.0
  %148 = vmatpush1.msra.mxu0 0.0
  %149 = vmatprep.subr.mxu0 0.0
  %150 = vmatpush1.msra.mxu0 0.0
  %151 = vmatprep.subr.mxu0 0.0
  %152 = vmatpush1.msra.mxu0 0.0
  %153 = vmatprep.subr.mxu0 0.0
  %154 = vmatpush1.msra.mxu0 0.0
  %155 = vmatprep.subr.mxu0 0.0
  %156 = vmatpush1.msra.mxu0 0.0
  %157 = vmatprep.subr.mxu0 0.0
  %158 = vmatpush1.msra.mxu0 0.0
  %159 = vmatprep.subr.mxu0 0.0
  %160 = vmatpush1.msra.mxu0 0.0
  %161 = vmatprep.subr.mxu0 0.0
  %162 = vmatpush1.msra.mxu0 0.0
  %163 = vmatprep.subr.mxu0 0.0
  %164 = vmatpush1.msra.mxu0 0.0
  %165 = vmatprep.subr.mxu0 0.0
  %166 = vmatpush1.msra.mxu0 0.0
  %167 = vmatprep.subr.mxu0 0.0
  %168 = vmatpush1.msra.mxu0 0.0
  %169 = vmatprep.mubr.f32.mxu0 0.0
  %170 = vmatmul.mubr.f32.gmra.mrb[0].mxu0 %v89
  %v171 = vpop.f32.mrb[0].mxu0
  %v172 = vadd.f32 0.0, %v171
  %v173 = vpop.f32.mrb[0].mxu0
  %174 = vmatprep.mubr.f32.mxu0 0.0
  %175 = vmatmul.mubr.f32.gmra.mrb[0].mxu0 %v91
  %v176 = vpop.f32.mrb[0].mxu0
  %v177 = vadd.f32 0.0, %v176
  %v178 = vpop.f32.mrb[0].mxu0
  %179 = vmatprep.mubr.f32.mxu0 0.0
  %180 = vmatmul.mubr.f32.gmra.mrb[0].mxu0 %v93
  %v181 = vpop.f32.mrb[0].mxu0
  %v182 = vadd.f32 0.0, %v181
  %v183 = vpop.f32.mrb[0].mxu0
  %184 = vmatprep.mubr.f32.mxu0 0.0
  %185 = vmatmul.mubr.f32.gmra.mrb[0].mxu0 %v95
  %v186 = vpop.f32.mrb[0].mxu0
  %v187 = vadd.f32 0.0, %v186
  %v188 = vpop.f32.mrb[0].mxu0
  %189 = vmatprep.mubr.f32.mxu0 0.0
  %190 = vmatmul.mubr.f32.gmra.mrb[0].mxu0 %v97
  %v191 = vpop.f32.mrb[0].mxu0
  %v192 = vadd.f32 0.0, %v191
  %v193 = vpop.f32.mrb[0].mxu0
  %194 = vmatprep.mubr.f32.mxu0 0.0
  %195 = vmatmul.mubr.f32.gmra.mrb[0].mxu0 %v99
  %v196 = vpop.f32.mrb[0].mxu0
  %v197 = vadd.f32 0.0, %v196
  %v198 = vpop.f32.mrb[0].mxu0
  %199 = vmatprep.mubr.f32.mxu0 0.0
  %200 = vmatmul.mubr.f32.gmra.mrb[0].mxu0 %v101
  %v201 = vpop.f32.mrb[0].mxu0
  %v202 = vadd.f32 0.0, %v201
  %v203 = vpop.f32.mrb[0].mxu0
  %204 = vmatprep.mubr.f32.mxu0 0.0
  %205 = vmatmul.mubr.f32.gmra.mrb[0].mxu0 %v103
  %v206 = vpop.f32.mrb[0].mxu0
  %v207 = vadd.f32 0.0, %v206
  %v208 = vpop.f32.mrb[0].mxu0
  %209 = vdwg.mxu0
  %v210 = vsel %vm88, %v23, 0
  %v212 = vsel %vm88, %v25, 0
  %v214 = vsel %vm88, %v27, 0
  %v216 = vsel %vm88, %v29, 0
  %v218 = vsel %vm88, %v31, 0
  %v220 = vsel %vm88, %v33, 0
  %v222 = vsel %vm88, %v35, 0
  %v224 = vsel %vm88, %v37, 0
  %226 = vmatprep.subr.mxu0 0.0
  %227 = vmatpush1.msra.mxu0 %v39
  %228 = vmatprep.subr.mxu0 0.0
  %229 = vmatpush1.msra.mxu0 %v40
  %230 = vmatprep.subr.mxu0 0.0
  %231 = vmatpush1.msra.mxu0 %v41
  %232 = vmatprep.subr.mxu0 0.0
  %233 = vmatpush1.msra.mxu0 %v42
  %234 = vmatprep.subr.mxu0 0.0
  %235 = vmatpush1.msra.mxu0 0.0
  %236 = vmatprep.subr.mxu0 0.0
  %237 = vmatpush1.msra.mxu0 0.0
  %238 = vmatprep.subr.mxu0 0.0
  %239 = vmatpush1.msra.mxu0 0.0
  %240 = vmatprep.subr.mxu0 0.0
  %241 = vmatpush1.msra.mxu0 0.0
  %242 = vmatprep.subr.mxu0 0.0
  %243 = vmatpush1.msra.mxu0 0.0
  %244 = vmatprep.subr.mxu0 0.0
  %245 = vmatpush1.msra.mxu0 0.0
  %246 = vmatprep.subr.mxu0 0.0
  %247 = vmatpush1.msra.mxu0 0.0
  %248 = vmatprep.subr.mxu0 0.0
  %249 = vmatpush1.msra.mxu0 0.0
  %250 = vmatprep.subr.mxu0 0.0
  %251 = vmatpush1.msra.mxu0 0.0
  %252 = vmatprep.subr.mxu0 0.0
  %253 = vmatpush1.msra.mxu0 0.0
  %254 = vmatprep.subr.mxu0 0.0
  %255 = vmatpush1.msra.mxu0 0.0
  %256 = vmatprep.subr.mxu0 0.0
  %257 = vmatpush1.msra.mxu0 0.0
  %258 = vmatprep.subr.mxu0 0.0
  %259 = vmatpush1.msra.mxu0 0.0
  %260 = vmatprep.subr.mxu0 0.0
  %261 = vmatpush1.msra.mxu0 0.0
  %262 = vmatprep.subr.mxu0 0.0
  %263 = vmatpush1.msra.mxu0 0.0
  %264 = vmatprep.subr.mxu0 0.0
  %265 = vmatpush1.msra.mxu0 0.0
  %266 = vmatprep.subr.mxu0 0.0
  %267 = vmatpush1.msra.mxu0 0.0
  %268 = vmatprep.subr.mxu0 0.0
  %269 = vmatpush1.msra.mxu0 0.0
  %270 = vmatprep.subr.mxu0 0.0
  %271 = vmatpush1.msra.mxu0 0.0
  %272 = vmatprep.subr.mxu0 0.0
  %273 = vmatpush1.msra.mxu0 0.0
  %274 = vmatprep.subr.mxu0 0.0
  %275 = vmatpush1.msra.mxu0 0.0
  %276 = vmatprep.subr.mxu0 0.0
  %277 = vmatpush1.msra.mxu0 0.0
  %278 = vmatprep.subr.mxu0 0.0
  %279 = vmatpush1.msra.mxu0 0.0
  %280 = vmatprep.subr.mxu0 0.0
  %281 = vmatpush1.msra.mxu0 0.0
  %282 = vmatprep.subr.mxu0 0.0
  %283 = vmatpush1.msra.mxu0 0.0
  %284 = vmatprep.subr.mxu0 0.0
  %285 = vmatpush1.msra.mxu0 0.0
  %286 = vmatprep.subr.mxu0 0.0
  %287 = vmatpush1.msra.mxu0 0.0
  %288 = vmatprep.subr.mxu0 0.0
  %289 = vmatpush1.msra.mxu0 0.0
  %290 = vmatprep.mubr.f32.mxu0 0.0
  %291 = vmatmul.mubr.f32.gmra.mrb[0].mxu0 %v210
  %v292 = vpop.f32.mrb[0].mxu0
  %v293 = vadd.f32 %v172, %v292
  %v294 = vpop.f32.mrb[0].mxu0
  %295 = vmatprep.mubr.f32.mxu0 0.0
  %296 = vmatmul.mubr.f32.gmra.mrb[0].mxu0 %v212
  %v297 = vpop.f32.mrb[0].mxu0
  %v298 = vadd.f32 %v177, %v297
  %v299 = vpop.f32.mrb[0].mxu0
  %300 = vmatprep.mubr.f32.mxu0 0.0
  %301 = vmatmul.mubr.f32.gmra.mrb[0].mxu0 %v214
  %v302 = vpop.f32.mrb[0].mxu0
  %v303 = vadd.f32 %v182, %v302
  %v304 = vpop.f32.mrb[0].mxu0
  %305 = vmatprep.mubr.f32.mxu0 0.0
  %306 = vmatmul.mubr.f32.gmra.mrb[0].mxu0 %v216
  %v307 = vpop.f32.mrb[0].mxu0
  %v308 = vadd.f32 %v187, %v307
  %v309 = vpop.f32.mrb[0].mxu0
  %310 = vmatprep.mubr.f32.mxu0 0.0
  %311 = vmatmul.mubr.f32.gmra.mrb[0].mxu0 %v218
  %v312 = vpop.f32.mrb[0].mxu0
  %v313 = vadd.f32 %v192, %v312
  %v314 = vpop.f32.mrb[0].mxu0
  %315 = vmatprep.mubr.f32.mxu0 0.0
  %316 = vmatmul.mubr.f32.gmra.mrb[0].mxu0 %v220
  %v317 = vpop.f32.mrb[0].mxu0
  %v318 = vadd.f32 %v197, %v317
  %v319 = vpop.f32.mrb[0].mxu0
  %320 = vmatprep.mubr.f32.mxu0 0.0
  %321 = vmatmul.mubr.f32.gmra.mrb[0].mxu0 %v222
  %v322 = vpop.f32.mrb[0].mxu0
  %v323 = vadd.f32 %v202, %v322
  %v324 = vpop.f32.mrb[0].mxu0
  %325 = vmatprep.mubr.f32.mxu0 0.0
  %326 = vmatmul.mubr.f32.gmra.mrb[0].mxu0 %v224
  %v327 = vpop.f32.mrb[0].mxu0
  %v328 = vadd.f32 %v207, %v327
  %v329 = vpop.f32.mrb[0].mxu0
  %330 = vdwg.mxu0
  %vm331 = vcmask 1045504
  %v332 = vrot.slane %v23, 2
  %v333 = vrot.slane %v24, 2
  %v334 = vsel %vm331, %v332, %v333
  %v335 = vrot.slane %v25, 2
  %v336 = vrot.slane %v26, 2
  %v337 = vsel %vm331, %v335, %v336
  %v338 = vrot.slane %v27, 2
  %v339 = vrot.slane %v28, 2
  %v340 = vsel %vm331, %v338, %v339
  %v341 = vrot.slane %v29, 2
  %v342 = vrot.slane %v30, 2
  %v343 = vsel %vm331, %v341, %v342
  %v344 = vrot.slane %v31, 2
  %v345 = vrot.slane %v32, 2
  %v346 = vsel %vm331, %v344, %v345
  %v347 = vrot.slane %v33, 2
  %v348 = vrot.slane %v34, 2
  %v349 = vsel %vm331, %v347, %v348
  %v350 = vrot.slane %v35, 2
  %v351 = vrot.slane %v36, 2
  %v352 = vsel %vm331, %v350, %v351
  %v353 = vrot.slane %v37, 2
  %v354 = vrot.slane %v38, 2
  %v355 = vsel %vm331, %v353, %v354
  %v356 = vld [vmem:[%s1 + $0x40] sm:$0xff]
  %v357 = vld [vmem:[%s1 + $0x48] sm:$0xff]
  %v358 = vld [vmem:[%s1 + $0x50] sm:$0xff]
  %v359 = vld [vmem:[%s1 + $0x58] sm:$0xff]
  %v360 = vsel %vm88, %v334, 0
  %v362 = vsel %vm88, %v337, 0
  %v364 = vsel %vm88, %v340, 0
  %v366 = vsel %vm88, %v343, 0
  %v368 = vsel %vm88, %v346, 0
  %v370 = vsel %vm88, %v349, 0
  %v372 = vsel %vm88, %v352, 0
  %v374 = vsel %vm88, %v355, 0
  %376 = vmatprep.subr.mxu0 0.0
  %377 = vmatpush1.msra.mxu0 %v356
  %378 = vmatprep.subr.mxu0 0.0
  %379 = vmatpush1.msra.mxu0 %v357
  %380 = vmatprep.subr.mxu0 0.0
  %381 = vmatpush1.msra.mxu0 %v358
  %382 = vmatprep.subr.mxu0 0.0
  %383 = vmatpush1.msra.mxu0 %v359
  %384 = vmatprep.subr.mxu0 0.0
  %385 = vmatpush1.msra.mxu0 0.0
  %386 = vmatprep.subr.mxu0 0.0
  %387 = vmatpush1.msra.mxu0 0.0
  %388 = vmatprep.subr.mxu0 0.0
  %389 = vmatpush1.msra.mxu0 0.0
  %390 = vmatprep.subr.mxu0 0.0
  %391 = vmatpush1.msra.mxu0 0.0
  %392 = vmatprep.subr.mxu0 0.0
  %393 = vmatpush1.msra.mxu0 0.0
  %394 = vmatprep.subr.mxu0 0.0
  %395 = vmatpush1.msra.mxu0 0.0
  %396 = vmatprep.subr.mxu0 0.0
  %397 = vmatpush1.msra.mxu0 0.0
  %398 = vmatprep.subr.mxu0 0.0
  %399 = vmatpush1.msra.mxu0 0.0
  %400 = vmatprep.subr.mxu0 0.0
  %401 = vmatpush1.msra.mxu0 0.0
  %402 = vmatprep.subr.mxu0 0.0
  %403 = vmatpush1.msra.mxu0 0.0
  %404 = vmatprep.subr.mxu0 0.0
  %405 = vmatpush1.msra.mxu0 0.0
  %406 = vmatprep.subr.mxu0 0.0
  %407 = vmatpush1.msra.mxu0 0.0
  %408 = vmatprep.subr.mxu0 0.0
  %409 = vmatpush1.msra.mxu0 0.0
  %410 = vmatprep.subr.mxu0 0.0
  %411 = vmatpush1.msra.mxu0 0.0
  %412 = vmatprep.subr.mxu0 0.0
  %413 = vmatpush1.msra.mxu0 0.0
  %414 = vmatprep.subr.mxu0 0.0
  %415 = vmatpush1.msra.mxu0 0.0
  %416 = vmatprep.subr.mxu0 0.0
  %417 = vmatpush1.msra.mxu0 0.0
  %418 = vmatprep.subr.mxu0 0.0
  %419 = vmatpush1.msra.mxu0 0.0
  %420 = vmatprep.subr.mxu0 0.0
  %421 = vmatpush1.msra.mxu0 0.0
  %422 = vmatprep.subr.mxu0 0.0
  %423 = vmatpush1.msra.mxu0 0.0
  %424 = vmatprep.subr.mxu0 0.0
  %425 = vmatpush1.msra.mxu0 0.0
  %426 = vmatprep.subr.mxu0 0.0
  %427 = vmatpush1.msra.mxu0 0.0
  %428 = vmatprep.subr.mxu0 0.0
  %429 = vmatpush1.msra.mxu0 0.0
  %430 = vmatprep.subr.mxu0 0.0
  %431 = vmatpush1.msra.mxu0 0.0
  %432 = vmatprep.subr.mxu0 0.0
  %433 = vmatpush1.msra.mxu0 0.0
  %434 = vmatprep.subr.mxu0 0.0
  %435 = vmatpush1.msra.mxu0 0.0
  %436 = vmatprep.subr.mxu0 0.0
  %437 = vmatpush1.msra.mxu0 0.0
  %438 = vmatprep.subr.mxu0 0.0
  %439 = vmatpush1.msra.mxu0 0.0
  %440 = vmatprep.mubr.f32.mxu0 0.0
  %441 = vmatmul.mubr.f32.gmra.mrb[0].mxu0 %v360
  %v442 = vpop.f32.mrb[0].mxu0
  %v443 = vadd.f32 0.0, %v442
  %v444 = vpop.f32.mrb[0].mxu0
  %445 = vmatprep.mubr.f32.mxu0 0.0
  %446 = vmatmul.mubr.f32.gmra.mrb[0].mxu0 %v362
  %v447 = vpop.f32.mrb[0].mxu0
  %v448 = vadd.f32 0.0, %v447
  %v449 = vpop.f32.mrb[0].mxu0
  %450 = vmatprep.mubr.f32.mxu0 0.0
  %451 = vmatmul.mubr.f32.gmra.mrb[0].mxu0 %v364
  %v452 = vpop.f32.mrb[0].mxu0
  %v453 = vadd.f32 0.0, %v452
  %v454 = vpop.f32.mrb[0].mxu0
  %455 = vmatprep.mubr.f32.mxu0 0.0
  %456 = vmatmul.mubr.f32.gmra.mrb[0].mxu0 %v366
  %v457 = vpop.f32.mrb[0].mxu0
  %v458 = vadd.f32 0.0, %v457
  %v459 = vpop.f32.mrb[0].mxu0
  %460 = vmatprep.mubr.f32.mxu0 0.0
  %461 = vmatmul.mubr.f32.gmra.mrb[0].mxu0 %v368
  %v462 = vpop.f32.mrb[0].mxu0
  %v463 = vadd.f32 0.0, %v462
  %v464 = vpop.f32.mrb[0].mxu0
  %465 = vmatprep.mubr.f32.mxu0 0.0
  %466 = vmatmul.mubr.f32.gmra.mrb[0].mxu0 %v370
  %v467 = vpop.f32.mrb[0].mxu0
  %v468 = vadd.f32 0.0, %v467
  %v469 = vpop.f32.mrb[0].mxu0
  %470 = vmatprep.mubr.f32.mxu0 0.0
  %471 = vmatmul.mubr.f32.gmra.mrb[0].mxu0 %v372
  %v472 = vpop.f32.mrb[0].mxu0
  %v473 = vadd.f32 0.0, %v472
  %v474 = vpop.f32.mrb[0].mxu0
  %475 = vmatprep.mubr.f32.mxu0 0.0
  %476 = vmatmul.mubr.f32.gmra.mrb[0].mxu0 %v374
  %v477 = vpop.f32.mrb[0].mxu0
  %v478 = vadd.f32 0.0, %v477
  %v479 = vpop.f32.mrb[0].mxu0
  %480 = vdwg.mxu0
  %v481 = vadd.f32 %v293, %v443
  %v482 = vadd.f32 %v298, %v448
  %v483 = vadd.f32 %v303, %v453
  %v484 = vadd.f32 %v308, %v458
  %v485 = vadd.f32 %v313, %v463
  %v486 = vadd.f32 %v318, %v468
  %v487 = vadd.f32 %v323, %v473
  %v488 = vadd.f32 %v328, %v478
  %vm489 = vcmask 1044480
  %v490 = vrot.slane %v23, 3
  %v491 = vrot.slane %v24, 3
  %v492 = vsel %vm489, %v490, %v491
  %v493 = vrot.slane %v25, 3
  %v494 = vrot.slane %v26, 3
  %v495 = vsel %vm489, %v493, %v494
  %v496 = vrot.slane %v27, 3
  %v497 = vrot.slane %v28, 3
  %v498 = vsel %vm489, %v496, %v497
  %v499 = vrot.slane %v29, 3
  %v500 = vrot.slane %v30, 3
  %v501 = vsel %vm489, %v499, %v500
  %v502 = vrot.slane %v31, 3
  %v503 = vrot.slane %v32, 3
  %v504 = vsel %vm489, %v502, %v503
  %v505 = vrot.slane %v33, 3
  %v506 = vrot.slane %v34, 3
  %v507 = vsel %vm489, %v505, %v506
  %v508 = vrot.slane %v35, 3
  %v509 = vrot.slane %v36, 3
  %v510 = vsel %vm489, %v508, %v509
  %v511 = vrot.slane %v37, 3
  %v512 = vrot.slane %v38, 3
  %v513 = vsel %vm489, %v511, %v512
  %v514 = vld [vmem:[%s1 + $0x60] sm:$0xff]
  %v515 = vld [vmem:[%s1 + $0x68] sm:$0xff]
  %v516 = vld [vmem:[%s1 + $0x70] sm:$0xff]
  %v517 = vld [vmem:[%s1 + $0x78] sm:$0xff]
  %v518 = vsel %vm88, %v492, 0
  %v520 = vsel %vm88, %v495, 0
  %v522 = vsel %vm88, %v498, 0
  %v524 = vsel %vm88, %v501, 0
  %v526 = vsel %vm88, %v504, 0
  %v528 = vsel %vm88, %v507, 0
  %v530 = vsel %vm88, %v510, 0
  %v532 = vsel %vm88, %v513, 0
  %534 = vmatprep.subr.mxu0 0.0
  %535 = vmatpush1.msra.mxu0 %v514
  %536 = vmatprep.subr.mxu0 0.0
  %537 = vmatpush1.msra.mxu0 %v515
  %538 = vmatprep.subr.mxu0 0.0
  %539 = vmatpush1.msra.mxu0 %v516
  %540 = vmatprep.subr.mxu0 0.0
  %541 = vmatpush1.msra.mxu0 %v517
  %542 = vmatprep.subr.mxu0 0.0
  %543 = vmatpush1.msra.mxu0 0.0
  %544 = vmatprep.subr.mxu0 0.0
  %545 = vmatpush1.msra.mxu0 0.0
  %546 = vmatprep.subr.mxu0 0.0
  %547 = vmatpush1.msra.mxu0 0.0
  %548 = vmatprep.subr.mxu0 0.0
  %549 = vmatpush1.msra.mxu0 0.0
  %550 = vmatprep.subr.mxu0 0.0
  %551 = vmatpush1.msra.mxu0 0.0
  %552 = vmatprep.subr.mxu0 0.0
  %553 = vmatpush1.msra.mxu0 0.0
  %554 = vmatprep.subr.mxu0 0.0
  %555 = vmatpush1.msra.mxu0 0.0
  %556 = vmatprep.subr.mxu0 0.0
  %557 = vmatpush1.msra.mxu0 0.0
  %558 = vmatprep.subr.mxu0 0.0
  %559 = vmatpush1.msra.mxu0 0.0
  %560 = vmatprep.subr.mxu0 0.0
  %561 = vmatpush1.msra.mxu0 0.0
  %562 = vmatprep.subr.mxu0 0.0
  %563 = vmatpush1.msra.mxu0 0.0
  %564 = vmatprep.subr.mxu0 0.0
  %565 = vmatpush1.msra.mxu0 0.0
  %566 = vmatprep.subr.mxu0 0.0
  %567 = vmatpush1.msra.mxu0 0.0
  %568 = vmatprep.subr.mxu0 0.0
  %569 = vmatpush1.msra.mxu0 0.0
  %570 = vmatprep.subr.mxu0 0.0
  %571 = vmatpush1.msra.mxu0 0.0
  %572 = vmatprep.subr.mxu0 0.0
  %573 = vmatpush1.msra.mxu0 0.0
  %574 = vmatprep.subr.mxu0 0.0
  %575 = vmatpush1.msra.mxu0 0.0
  %576 = vmatprep.subr.mxu0 0.0
  %577 = vmatpush1.msra.mxu0 0.0
  %578 = vmatprep.subr.mxu0 0.0
  %579 = vmatpush1.msra.mxu0 0.0
  %580 = vmatprep.subr.mxu0 0.0
  %581 = vmatpush1.msra.mxu0 0.0
  %582 = vmatprep.subr.mxu0 0.0
  %583 = vmatpush1.msra.mxu0 0.0
  %584 = vmatprep.subr.mxu0 0.0
  %585 = vmatpush1.msra.mxu0 0.0
  %586 = vmatprep.subr.mxu0 0.0
  %587 = vmatpush1.msra.mxu0 0.0
  %588 = vmatprep.subr.mxu0 0.0
  %589 = vmatpush1.msra.mxu0 0.0
  %590 = vmatprep.subr.mxu0 0.0
  %591 = vmatpush1.msra.mxu0 0.0
  %592 = vmatprep.subr.mxu0 0.0
  %593 = vmatpush1.msra.mxu0 0.0
  %594 = vmatprep.subr.mxu0 0.0
  %595 = vmatpush1.msra.mxu0 0.0
  %596 = vmatprep.subr.mxu0 0.0
  %597 = vmatpush1.msra.mxu0 0.0
  %598 = vmatprep.mubr.f32.mxu0 0.0
  %599 = vmatmul.mubr.f32.gmra.mrb[0].mxu0 %v518
  %v600 = vpop.f32.mrb[0].mxu0
  %v601 = vadd.f32 0.0, %v600
  %v602 = vpop.f32.mrb[0].mxu0
  %603 = vmatprep.mubr.f32.mxu0 0.0
  %604 = vmatmul.mubr.f32.gmra.mrb[0].mxu0 %v520
  %v605 = vpop.f32.mrb[0].mxu0
  %v606 = vadd.f32 0.0, %v605
  %v607 = vpop.f32.mrb[0].mxu0
  %608 = vmatprep.mubr.f32.mxu0 0.0
  %609 = vmatmul.mubr.f32.gmra.mrb[0].mxu0 %v522
  %v610 = vpop.f32.mrb[0].mxu0
  %v611 = vadd.f32 0.0, %v610
  %v612 = vpop.f32.mrb[0].mxu0
  %613 = vmatprep.mubr.f32.mxu0 0.0
  %614 = vmatmul.mubr.f32.gmra.mrb[0].mxu0 %v524
  %v615 = vpop.f32.mrb[0].mxu0
  %v616 = vadd.f32 0.0, %v615
  %v617 = vpop.f32.mrb[0].mxu0
  %618 = vmatprep.mubr.f32.mxu0 0.0
  %619 = vmatmul.mubr.f32.gmra.mrb[0].mxu0 %v526
  %v620 = vpop.f32.mrb[0].mxu0
  %v621 = vadd.f32 0.0, %v620
  %v622 = vpop.f32.mrb[0].mxu0
  %623 = vmatprep.mubr.f32.mxu0 0.0
  %624 = vmatmul.mubr.f32.gmra.mrb[0].mxu0 %v528
  %v625 = vpop.f32.mrb[0].mxu0
  %v626 = vadd.f32 0.0, %v625
  %v627 = vpop.f32.mrb[0].mxu0
  %628 = vmatprep.mubr.f32.mxu0 0.0
  %629 = vmatmul.mubr.f32.gmra.mrb[0].mxu0 %v530
  %v630 = vpop.f32.mrb[0].mxu0
  %v631 = vadd.f32 0.0, %v630
  %v632 = vpop.f32.mrb[0].mxu0
  %633 = vmatprep.mubr.f32.mxu0 0.0
  %634 = vmatmul.mubr.f32.gmra.mrb[0].mxu0 %v532
  %v635 = vpop.f32.mrb[0].mxu0
  %v636 = vadd.f32 0.0, %v635
  %v637 = vpop.f32.mrb[0].mxu0
  %638 = vdwg.mxu0
  %v639 = vadd.f32 %v481, %v601
  %v640 = vadd.f32 %v482, %v606
  %v641 = vadd.f32 %v483, %v611
  %v642 = vadd.f32 %v484, %v616
  %v643 = vadd.f32 %v485, %v621
  %v644 = vadd.f32 %v486, %v626
  %v645 = vadd.f32 %v487, %v631
  %v646 = vadd.f32 %v488, %v636
  %vm647 = vcmask 1043456
  %v648 = vrot.slane %v23, 4
  %v649 = vrot.slane %v24, 4
  %v650 = vsel %vm647, %v648, %v649
  %v651 = vrot.slane %v25, 4
  %v652 = vrot.slane %v26, 4
  %v653 = vsel %vm647, %v651, %v652
  %v654 = vrot.slane %v27, 4
  %v655 = vrot.slane %v28, 4
  %v656 = vsel %vm647, %v654, %v655
  %v657 = vrot.slane %v29, 4
  %v658 = vrot.slane %v30, 4
  %v659 = vsel %vm647, %v657, %v658
  %v660 = vrot.slane %v31, 4
  %v661 = vrot.slane %v32, 4
  %v662 = vsel %vm647, %v660, %v661
  %v663 = vrot.slane %v33, 4
  %v664 = vrot.slane %v34, 4
  %v665 = vsel %vm647, %v663, %v664
  %v666 = vrot.slane %v35, 4
  %v667 = vrot.slane %v36, 4
  %v668 = vsel %vm647, %v666, %v667
  %v669 = vrot.slane %v37, 4
  %v670 = vrot.slane %v38, 4
  %v671 = vsel %vm647, %v669, %v670
  %v672 = vld [vmem:[%s1 + $0x80] sm:$0xff]
  %v673 = vld [vmem:[%s1 + $0x88] sm:$0xff]
  %v674 = vld [vmem:[%s1 + $0x90] sm:$0xff]
  %v675 = vld [vmem:[%s1 + $0x98] sm:$0xff]
  %v676 = vsel %vm88, %v650, 0
  %v678 = vsel %vm88, %v653, 0
  %v680 = vsel %vm88, %v656, 0
  %v682 = vsel %vm88, %v659, 0
  %v684 = vsel %vm88, %v662, 0
  %v686 = vsel %vm88, %v665, 0
  %v688 = vsel %vm88, %v668, 0
  %v690 = vsel %vm88, %v671, 0
  %692 = vmatprep.subr.mxu0 0.0
  %693 = vmatpush1.msra.mxu0 %v672
  %694 = vmatprep.subr.mxu0 0.0
  %695 = vmatpush1.msra.mxu0 %v673
  %696 = vmatprep.subr.mxu0 0.0
  %697 = vmatpush1.msra.mxu0 %v674
  %698 = vmatprep.subr.mxu0 0.0
  %699 = vmatpush1.msra.mxu0 %v675
  %700 = vmatprep.subr.mxu0 0.0
  %701 = vmatpush1.msra.mxu0 0.0
  %702 = vmatprep.subr.mxu0 0.0
  %703 = vmatpush1.msra.mxu0 0.0
  %704 = vmatprep.subr.mxu0 0.0
  %705 = vmatpush1.msra.mxu0 0.0
  %706 = vmatprep.subr.mxu0 0.0
  %707 = vmatpush1.msra.mxu0 0.0
  %708 = vmatprep.subr.mxu0 0.0
  %709 = vmatpush1.msra.mxu0 0.0
  %710 = vmatprep.subr.mxu0 0.0
  %711 = vmatpush1.msra.mxu0 0.0
  %712 = vmatprep.subr.mxu0 0.0
  %713 = vmatpush1.msra.mxu0 0.0
  %714 = vmatprep.subr.mxu0 0.0
  %715 = vmatpush1.msra.mxu0 0.0
  %716 = vmatprep.subr.mxu0 0.0
  %717 = vmatpush1.msra.mxu0 0.0
  %718 = vmatprep.subr.mxu0 0.0
  %719 = vmatpush1.msra.mxu0 0.0
  %720 = vmatprep.subr.mxu0 0.0
  %721 = vmatpush1.msra.mxu0 0.0
  %722 = vmatprep.subr.mxu0 0.0
  %723 = vmatpush1.msra.mxu0 0.0
  %724 = vmatprep.subr.mxu0 0.0
  %725 = vmatpush1.msra.mxu0 0.0
  %726 = vmatprep.subr.mxu0 0.0
  %727 = vmatpush1.msra.mxu0 0.0
  %728 = vmatprep.subr.mxu0 0.0
  %729 = vmatpush1.msra.mxu0 0.0
  %730 = vmatprep.subr.mxu0 0.0
  %731 = vmatpush1.msra.mxu0 0.0
  %732 = vmatprep.subr.mxu0 0.0
  %733 = vmatpush1.msra.mxu0 0.0
  %734 = vmatprep.subr.mxu0 0.0
  %735 = vmatpush1.msra.mxu0 0.0
  %736 = vmatprep.subr.mxu0 0.0
  %737 = vmatpush1.msra.mxu0 0.0
  %738 = vmatprep.subr.mxu0 0.0
  %739 = vmatpush1.msra.mxu0 0.0
  %740 = vmatprep.subr.mxu0 0.0
  %741 = vmatpush1.msra.mxu0 0.0
  %742 = vmatprep.subr.mxu0 0.0
  %743 = vmatpush1.msra.mxu0 0.0
  %744 = vmatprep.subr.mxu0 0.0
  %745 = vmatpush1.msra.mxu0 0.0
  %746 = vmatprep.subr.mxu0 0.0
  %747 = vmatpush1.msra.mxu0 0.0
  %748 = vmatprep.subr.mxu0 0.0
  %749 = vmatpush1.msra.mxu0 0.0
  %750 = vmatprep.subr.mxu0 0.0
  %751 = vmatpush1.msra.mxu0 0.0
  %752 = vmatprep.subr.mxu0 0.0
  %753 = vmatpush1.msra.mxu0 0.0
  %754 = vmatprep.subr.mxu0 0.0
  %755 = vmatpush1.msra.mxu0 0.0
  %756 = vmatprep.mubr.f32.mxu0 0.0
  %757 = vmatmul.mubr.f32.gmra.mrb[0].mxu0 %v676
  %v758 = vpop.f32.mrb[0].mxu0
  %v759 = vadd.f32 0.0, %v758
  %v760 = vpop.f32.mrb[0].mxu0
  %761 = vmatprep.mubr.f32.mxu0 0.0
  %762 = vmatmul.mubr.f32.gmra.mrb[0].mxu0 %v678
  %v763 = vpop.f32.mrb[0].mxu0
  %v764 = vadd.f32 0.0, %v763
  %v765 = vpop.f32.mrb[0].mxu0
  %766 = vmatprep.mubr.f32.mxu0 0.0
  %767 = vmatmul.mubr.f32.gmra.mrb[0].mxu0 %v680
  %v768 = vpop.f32.mrb[0].mxu0
  %v769 = vadd.f32 0.0, %v768
  %v770 = vpop.f32.mrb[0].mxu0
  %771 = vmatprep.mubr.f32.mxu0 0.0
  %772 = vmatmul.mubr.f32.gmra.mrb[0].mxu0 %v682
  %v773 = vpop.f32.mrb[0].mxu0
  %v774 = vadd.f32 0.0, %v773
  %v775 = vpop.f32.mrb[0].mxu0
  %776 = vmatprep.mubr.f32.mxu0 0.0
  %777 = vmatmul.mubr.f32.gmra.mrb[0].mxu0 %v684
  %v778 = vpop.f32.mrb[0].mxu0
  %v779 = vadd.f32 0.0, %v778
  %v780 = vpop.f32.mrb[0].mxu0
  %781 = vmatprep.mubr.f32.mxu0 0.0
  %782 = vmatmul.mubr.f32.gmra.mrb[0].mxu0 %v686
  %v783 = vpop.f32.mrb[0].mxu0
  %v784 = vadd.f32 0.0, %v783
  %v785 = vpop.f32.mrb[0].mxu0
  %786 = vmatprep.mubr.f32.mxu0 0.0
  %787 = vmatmul.mubr.f32.gmra.mrb[0].mxu0 %v688
  %v788 = vpop.f32.mrb[0].mxu0
  %v789 = vadd.f32 0.0, %v788
  %v790 = vpop.f32.mrb[0].mxu0
  %791 = vmatprep.mubr.f32.mxu0 0.0
  %792 = vmatmul.mubr.f32.gmra.mrb[0].mxu0 %v690
  %v793 = vpop.f32.mrb[0].mxu0
  %v794 = vadd.f32 0.0, %v793
  %v795 = vpop.f32.mrb[0].mxu0
  %796 = vdwg.mxu0
  %v797 = vadd.f32 %v639, %v759
  %v798 = vadd.f32 %v640, %v764
  %v799 = vadd.f32 %v641, %v769
  %v800 = vadd.f32 %v642, %v774
  %v801 = vadd.f32 %v643, %v779
  %v802 = vadd.f32 %v644, %v784
  %v803 = vadd.f32 %v645, %v789
  %v804 = vadd.f32 %v646, %v794
  %v805 = vld [vmem:[%s2] sm:$0x1]
  %v807 = vlaneseq
  %v808 = vshrl.u32 %v807, 7
  %v809 = vsub.s32 0, %v808
  %v810 = vrot.slane %v805, %v809
  %v812 = vadd.f32 %v797, %v810
  %v813 = vadd.f32 %v798, %v810
  %v814 = vadd.f32 %v799, %v810
  %v815 = vadd.f32 %v800, %v810
  %v816 = vadd.f32 %v801, %v810
  %v817 = vadd.f32 %v802, %v810
  %v818 = vadd.f32 %v803, %v810
  %v819 = vadd.f32 %v804, %v810
  %v820 = vmax.f32 %v812, 0.0
  %v821 = vmax.f32 %v813, 0.0
  %v822 = vmax.f32 %v814, 0.0
  %v823 = vmax.f32 %v815, 0.0
  %v824 = vmax.f32 %v816, 0.0
  %v825 = vmax.f32 %v817, 0.0
  %v826 = vmax.f32 %v818, 0.0
  %v827 = vmax.f32 %v819, 0.0
  %v828 = vld [vmem:[%s3] sm:$0xff]
  %v829 = vmul.f32 %v820, %v828
  %v830 = vmul.f32 %v821, %v828
  %v831 = vmul.f32 %v822, %v828
  %v832 = vmul.f32 %v823, %v828
  %v833 = vmul.f32 %v824, %v828
  %v834 = vmul.f32 %v825, %v828
  %v835 = vmul.f32 %v826, %v828
  %v836 = vmul.f32 %v827, %v828
  %v837 = vrot.slane %v829, 4
  %v838 = vmax.f32 %v829, %v837
  %v839 = vrot.slane %v838, 2
  %v840 = vmax.f32 %v838, %v839
  %v841 = vrot.slane %v840, 1
  %v842 = vmax.f32 %v840, %v841
  %v843 = vrot.slane %v830, 4
  %v844 = vmax.f32 %v830, %v843
  %v845 = vrot.slane %v844, 2
  %v846 = vmax.f32 %v844, %v845
  %v847 = vrot.slane %v846, 1
  %v848 = vmax.f32 %v846, %v847
  %v849 = vrot.slane %v831, 4
  %v850 = vmax.f32 %v831, %v849
  %v851 = vrot.slane %v850, 2
  %v852 = vmax.f32 %v850, %v851
  %v853 = vrot.slane %v852, 1
  %v854 = vmax.f32 %v852, %v853
  %v855 = vrot.slane %v832, 4
  %v856 = vmax.f32 %v832, %v855
  %v857 = vrot.slane %v856, 2
  %v858 = vmax.f32 %v856, %v857
  %v859 = vrot.slane %v858, 1
  %v860 = vmax.f32 %v858, %v859
  %v861 = vrot.slane %v833, 4
  %v862 = vmax.f32 %v833, %v861
  %v863 = vrot.slane %v862, 2
  %v864 = vmax.f32 %v862, %v863
  %v865 = vrot.slane %v864, 1
  %v866 = vmax.f32 %v864, %v865
  %v867 = vrot.slane %v834, 4
  %v868 = vmax.f32 %v834, %v867
  %v869 = vrot.slane %v868, 2
  %v870 = vmax.f32 %v868, %v869
  %v871 = vrot.slane %v870, 1
  %v872 = vmax.f32 %v870, %v871
  %v873 = vrot.slane %v835, 4
  %v874 = vmax.f32 %v835, %v873
  %v875 = vrot.slane %v874, 2
  %v876 = vmax.f32 %v874, %v875
  %v877 = vrot.slane %v876, 1
  %v878 = vmax.f32 %v876, %v877
  %v879 = vrot.slane %v836, 4
  %v880 = vmax.f32 %v836, %v879
  %v881 = vrot.slane %v880, 2
  %v882 = vmax.f32 %v880, %v881
  %v883 = vrot.slane %v882, 1
  %v884 = vmax.f32 %v882, %v883
  %v885 = vld [vmem:[%s4] sm:$0xff]
  %v886 = vld [vmem:[%s4 + $0x8] sm:$0xff]
  %v887 = vld [vmem:[%s4 + $0x10] sm:$0xff]
  %v888 = vld [vmem:[%s4 + $0x18] sm:$0xff]
  %v889 = vld [vmem:[%s4 + $0x20] sm:$0xff]
  %v890 = vld [vmem:[%s4 + $0x28] sm:$0xff]
  %v891 = vld [vmem:[%s4 + $0x30] sm:$0xff]
  %v892 = vld [vmem:[%s4 + $0x38] sm:$0xff]
  %v893 = vld [vmem:[%s4 + $0x40] sm:$0xff]
  %v894 = vld [vmem:[%s4 + $0x48] sm:$0xff]
  %v895 = vld [vmem:[%s4 + $0x50] sm:$0xff]
  %v896 = vld [vmem:[%s4 + $0x58] sm:$0xff]
  %v897 = vld [vmem:[%s4 + $0x60] sm:$0xff]
  %v898 = vld [vmem:[%s4 + $0x68] sm:$0xff]
  %v899 = vld [vmem:[%s4 + $0x70] sm:$0xff]
  %v900 = vld [vmem:[%s4 + $0x78] sm:$0xff]
  %v901 = vld [vmem:[%s5] sm:$0x1]
  %v903 = vlaneseq
  %v904 = vshrl.u32 %v903, 7
  %v905 = vsub.s32 0, %v904
  %v906 = vrot.slane %v901, %v905
  %vm916 = vcmask 1041409
  %v917 = vsel %vm916, %v848, %v842
  %vm918 = vcmask 1042434
  %v919 = vsel %vm918, %v854, %v917
  %vm920 = vcmask 1043459
  %v921 = vsel %vm920, %v860, %v919
  %vm922 = vcmask 1044484
  %v923 = vsel %vm922, %v866, %v921
  %vm924 = vcmask 1045509
  %v925 = vsel %vm924, %v872, %v923
  %vm926 = vcmask 1046534
  %v927 = vsel %vm926, %v878, %v925
  %vm928 = vcmask 1047559
  %v929 = vsel %vm928, %v884, %v927
  %931 = vmatprep.subr.mxu0 0.0
  %932 = vmatpush1.msra.mxu0 %v885
  %933 = vmatprep.subr.mxu0 0.0
  %934 = vmatpush1.msra.mxu0 %v886
  %935 = vmatprep.subr.mxu0 0.0
  %936 = vmatpush1.msra.mxu0 %v887
  %937 = vmatprep.subr.mxu0 0.0
  %938 = vmatpush1.msra.mxu0 %v888
  %939 = vmatprep.subr.mxu0 0.0
  %940 = vmatpush1.msra.mxu0 %v889
  %941 = vmatprep.subr.mxu0 0.0
  %942 = vmatpush1.msra.mxu0 %v890
  %943 = vmatprep.subr.mxu0 0.0
  %944 = vmatpush1.msra.mxu0 %v891
  %945 = vmatprep.subr.mxu0 0.0
  %946 = vmatpush1.msra.mxu0 %v892
  %947 = vmatprep.subr.mxu0 0.0
  %948 = vmatpush1.msra.mxu0 %v893
  %949 = vmatprep.subr.mxu0 0.0
  %950 = vmatpush1.msra.mxu0 %v894
  %951 = vmatprep.subr.mxu0 0.0
  %952 = vmatpush1.msra.mxu0 %v895
  %953 = vmatprep.subr.mxu0 0.0
  %954 = vmatpush1.msra.mxu0 %v896
  %955 = vmatprep.subr.mxu0 0.0
  %956 = vmatpush1.msra.mxu0 %v897
  %957 = vmatprep.subr.mxu0 0.0
  %958 = vmatpush1.msra.mxu0 %v898
  %959 = vmatprep.subr.mxu0 0.0
  %960 = vmatpush1.msra.mxu0 %v899
  %961 = vmatprep.subr.mxu0 0.0
  %962 = vmatpush1.msra.mxu0 %v900
  %963 = vmatprep.subr.mxu0 0.0
  %964 = vmatpush1.msra.mxu0 0.0
  %965 = vmatprep.subr.mxu0 0.0
  %966 = vmatpush1.msra.mxu0 0.0
  %967 = vmatprep.subr.mxu0 0.0
  %968 = vmatpush1.msra.mxu0 0.0
  %969 = vmatprep.subr.mxu0 0.0
  %970 = vmatpush1.msra.mxu0 0.0
  %971 = vmatprep.subr.mxu0 0.0
  %972 = vmatpush1.msra.mxu0 0.0
  %973 = vmatprep.subr.mxu0 0.0
  %974 = vmatpush1.msra.mxu0 0.0
  %975 = vmatprep.subr.mxu0 0.0
  %976 = vmatpush1.msra.mxu0 0.0
  %977 = vmatprep.subr.mxu0 0.0
  %978 = vmatpush1.msra.mxu0 0.0
  %979 = vmatprep.subr.mxu0 0.0
  %980 = vmatpush1.msra.mxu0 0.0
  %981 = vmatprep.subr.mxu0 0.0
  %982 = vmatpush1.msra.mxu0 0.0
  %983 = vmatprep.subr.mxu0 0.0
  %984 = vmatpush1.msra.mxu0 0.0
  %985 = vmatprep.subr.mxu0 0.0
  %986 = vmatpush1.msra.mxu0 0.0
  %987 = vmatprep.subr.mxu0 0.0
  %988 = vmatpush1.msra.mxu0 0.0
  %989 = vmatprep.subr.mxu0 0.0
  %990 = vmatpush1.msra.mxu0 0.0
  %991 = vmatprep.subr.mxu0 0.0
  %992 = vmatpush1.msra.mxu0 0.0
  %993 = vmatprep.subr.mxu0 0.0
  %994 = vmatpush1.msra.mxu0 0.0
  %995 = vmatprep.mubr.f32.mxu0 0.0
  %996 = vmatmul.mubr.f32.gmra.mrb[0].mxu0 %v929
  %v997 = vpop.f32.mrb[0].mxu0
  %v998 = vadd.f32 %v906, %v997
  %v999 = vpop.f32.mrb[0].mxu0
  %1000 = vdwg.mxu0
  %1001 = vst [vmem:[%s6] sm:$0xff] %v998
  // Predicated region
  $region26: #{model_cnn_forward.1} parent=0 // pred_check
    _
  $region27: #{model_cnn_forward.1} parent=0 // pred_check_branch
    %1003 = sbr.rel (0) target = $region29
  $region28: #{model_cnn_forward.1} parent=0 // pred_region
    _
  $region29: #{model_cnn_forward.1} parent=0 // pred_fallthru
    _
  // Predicated region
  $region30: #{model_cnn_forward.1} parent=0 // pred_check
    _
  $region31: #{model_cnn_forward.1} parent=0 // pred_check_branch
    %1005 = sbr.rel (0) target = $region33
  $region32: #{model_cnn_forward.1} parent=0 // pred_region
    _
  $region33: #{model_cnn_forward.1} parent=0 // pred_fallthru
    _

</llo_original>
